<compile_context>
chip_gen: v5e
topology: v5e:2x2
jax: 0.10.0
libtpu: 0.0.40
codegen_flags: <defaults>
</compile_context>

<pallas_src>
import jax
import jax.numpy as jnp
from jax.experimental import pallas as pl
from jax.experimental.pallas import tpu as pltpu


def _round_up(x, m):
    return ((x + m - 1) // m) * m


# ---------------------------------------------------------------------------
# Kernels
# ---------------------------------------------------------------------------

def _linear_kernel_2d(x_ref, w_ref, b_ref, o_ref):
    """One-shot (tm, tn) tile with full-K blocks.

    x_ref: (tm, K)   activation tile
    w_ref: (K, tn)   weight tile, (in, out) layout -> MXU-native contraction
    b_ref: (1, tn)   bias tile
    o_ref: (tm, tn)  output tile
    """
    acc = jnp.dot(x_ref[...], w_ref[...], preferred_element_type=jnp.float32)
    acc = acc + b_ref[...].astype(jnp.float32)
    o_ref[...] = acc.astype(o_ref.dtype)


def _linear_kernel_3d(x_ref, w_ref, b_ref, o_ref, acc_ref):
    """(tm, tn) tile accumulated over the K grid axis (f32 VMEM scratch)."""
    k = pl.program_id(2)

    @pl.when(k == 0)
    def _init():
        acc_ref[...] = jnp.zeros_like(acc_ref)

    acc_ref[...] += jnp.dot(x_ref[...], w_ref[...],
                            preferred_element_type=jnp.float32)

    @pl.when(k == pl.num_programs(2) - 1)
    def _finalize():
        o_ref[...] = (acc_ref[...] + b_ref[...].astype(jnp.float32)).astype(o_ref.dtype)


# ---------------------------------------------------------------------------
# Wrapper
# ---------------------------------------------------------------------------

def text_linear_forward(x, weight, bias, *, tm=512, tn=512, tk=1024,
                        k_collapse_budget_bytes=28 << 20,
                        vmem_soft_cap_bytes=40 << 20):
    """y = x @ weight.T + bias   (PyTorch nn.Linear semantics).

    x:      (..., in_feature)
    weight: (out_feature, in_feature)
    bias:   (out_feature,)
    returns (..., out_feature)
    """
    out_feature, in_feature = weight.shape
    lead_shape = x.shape[:-1]

    x2d = x.reshape(-1, in_feature)            # (M, K)
    M, K = x2d.shape
    N = out_feature

    # One-time HBM transpose to (K, N): contraction lands on the RHS sublane
    # dim so Mosaic never has to transpose weight vregs inside the hot loop.
    w_t = weight.T                              # (K, N)
    b2d = bias.reshape(1, N)

    isz = x2d.dtype.itemsize
    wsz = w_t.dtype.itemsize
    bsz = b2d.dtype.itemsize
    osz = x2d.dtype.itemsize

    # --- adaptive tile sizes -------------------------------------------------
    tm = max(8, min(tm, _round_up(M, 8)))       # f32 sublane multiple
    tn = max(128, min(tn, _round_up(N, 128)))   # lane-dense

    # v7x megacore: ensure >= 2 blocks on a "parallel" axis when possible so
    # both TensorCores get work.
    if pl.cdiv(M, tm) * pl.cdiv(N, tn) < 2:
        if M > 8:
            tm = max(8, _round_up(pl.cdiv(M, 2), 8))
        elif N > 128:
            tn = max(128, _round_up(pl.cdiv(N, 2), 128))

    grid_m = pl.cdiv(M, tm)
    grid_n = pl.cdiv(N, tn)

    # --- schedule choice: collapse K (2-D grid) when full-K blocks fit VMEM ---
    est_2d = (2 * tm * K * isz        # x tiles, double-buffered
              + 2 * K * tn * wsz      # weight tiles
              + 2 * tn * bsz          # bias tiles
              + 2 * tm * tn * osz)    # output tiles
    use_2d = est_2d <= k_collapse_budget_bytes

    if use_2d:
        grid = (grid_m, grid_n)
        in_specs = [
            pl.BlockSpec((tm, K), lambda i, j: (i, 0)),    # x, full-K block
            pl.BlockSpec((K, tn), lambda i, j: (0, j)),    # W^T, full-K block
            pl.BlockSpec((1, tn), lambda i, j: (0, j)),    # bias
        ]
        out_specs = pl.BlockSpec((tm, tn), lambda i, j: (i, j))
        scratch_shapes = []
        kernel = _linear_kernel_2d
        dim_sem = ("parallel", "parallel")
        est_vmem = est_2d
    else:
        tk = max(128, min(tk, _round_up(K, 128)))
        Kp = _round_up(K, tk)
        if Kp != K:
            # K padding is required for correctness only when the reduction
            # axis is tiled (stale boundary data would corrupt the sum).
            x2d = jnp.pad(x2d, ((0, 0), (0, Kp - K)))
            w_t = jnp.pad(w_t, ((0, Kp - K), (0, 0)))
        grid = (grid_m, grid_n, Kp // tk)
        in_specs = [
            pl.BlockSpec((tm, tk), lambda i, j, k: (i, k)),    # x
            pl.BlockSpec((tk, tn), lambda i, j, k: (k, j)),    # W^T
            pl.BlockSpec((1, tn), lambda i, j, k: (0, j)),     # bias
        ]
        out_specs = pl.BlockSpec((tm, tn), lambda i, j, k: (i, j))
        scratch_shapes = [pltpu.VMEM((tm, tn), jnp.float32)]
        kernel = _linear_kernel_3d
        dim_sem = ("parallel", "parallel", "arbitrary")
        est_vmem = (2 * tm * tk * isz + 2 * tk * tn * wsz + 2 * tn * bsz
                    + 2 * tm * tn * osz + tm * tn * 4)

    # Explicit VMEM budget: headroom for Mosaic internal scratch, capped so the
    # plan stays safe on v7x (64 MiB physical per TC).
    vmem_limit = min(int(est_vmem * 1.5) + (4 << 20), vmem_soft_cap_bytes)
    vmem_limit = max(vmem_limit, est_vmem + (2 << 20))

    # HBM traffic including revisits: x is re-read per N tile, W per M tile.
    cost = pl.CostEstimate(
        flops=2 * M * N * K,
        transcendentals=0,
        bytes_accessed=(M * K * isz * grid_n
                        + K * N * wsz * grid_m
                        + N * bsz * grid_m
                        + M * N * osz),
    )

    out2d = pl.pallas_call(
        kernel,
        out_shape=jax.ShapeDtypeStruct((M, N), x.dtype),
        grid_spec=pltpu.PrefetchScalarGridSpec(
            num_scalar_prefetch=0,
            grid=grid,
            in_specs=in_specs,
            out_specs=out_specs,
            scratch_shapes=scratch_shapes,
        ),
        compiler_params=pltpu.CompilerParams(
            dimension_semantics=dim_sem,
            vmem_limit_bytes=vmem_limit,
        ),
        cost_estimate=cost,
    )(x2d, w_t, b2d)

    return out2d.reshape(*lead_shape, N)


if __name__ == "__main__":
    # Shapes consistent with the module's forward: nn.Linear over the last dim
    # of a (batch, seq, in_feature) text-feature tensor.
    batch, seq = 2, 8
    in_feature, out_feature = 32, 32

    key = jax.random.PRNGKey(0)
    kx, kw, kb = jax.random.split(key, 3)

    # Deterministic init mimicking nn.Linear's uniform(-1/sqrt(in), 1/sqrt(in)).
    bound = 1.0 / jnp.sqrt(jnp.float32(in_feature))
    weight = jax.random.uniform(
        kw, (out_feature, in_feature), jnp.float32, minval=-bound, maxval=bound
    )
    bias = jax.random.uniform(
        kb, (out_feature,), jnp.float32, minval=-bound, maxval=bound
    )
    x = jax.random.normal(kx, (batch, seq, in_feature), jnp.float32)

    y = text_linear_forward(x, weight, bias)
    jax.block_until_ready(y)

    # Reference check against plain JAX (same math as torch nn.Linear).
    y_ref = x @ weight.T + bias
    assert y.shape == (batch, seq, out_feature)
    assert jnp.allclose(y, y_ref, atol=1e-5, rtol=1e-5)

    print("KERNEL_OK")
</pallas_src>

<mosaic_0001>
module attributes {stable_mosaic.version = 11 : i64} {
  func.func @_linear_kernel_2d(%arg0: i32, %arg1: i32, %arg2: memref<8x32xf32, #tpu.memory_space<vmem>>, %arg3: memref<32x128xf32, #tpu.memory_space<vmem>>, %arg4: memref<1x128xf32, #tpu.memory_space<vmem>>, %arg5: memref<8x128xf32, #tpu.memory_space<vmem>>) attributes {dimension_semantics = [#tpu.dimension_semantics<parallel>, #tpu.dimension_semantics<parallel>], iteration_bounds = array<i64: 2, 1>, scalar_prefetch = 0 : i64, scratch_operands = 0 : i64, tpu.core_type = #tpu.core_type<tc>, window_params = [{transform_indices = @transform_0, window_bounds = array<i64: 8, 32>}, {transform_indices = @transform_1, window_bounds = array<i64: 32, 128>}, {transform_indices = @transform_2, window_bounds = array<i64: 1, 128>}, {transform_indices = @transform_3, window_bounds = array<i64: 8, 128>}]} {
    %c0 = arith.constant 0 : index
    %c0_0 = arith.constant 0 : index
    %0 = vector.load %arg2[%c0, %c0_0] : memref<8x32xf32, #tpu.memory_space<vmem>>, vector<8x32xf32>
    %c0_1 = arith.constant 0 : index
    %c0_2 = arith.constant 0 : index
    %1 = vector.load %arg3[%c0_1, %c0_2] : memref<32x128xf32, #tpu.memory_space<vmem>>, vector<32x128xf32>
    %cst = arith.constant dense<0.000000e+00> : vector<8x128xf32>
    %2 = tpu.matmul %0, %1, %cst {dimension_numbers = #tpu.dot_dimension_numbers<[1], [0], [0], [1], [0, 0, 1, 1], [], []>} : vector<8x32xf32>, vector<32x128xf32>, vector<8x128xf32> -> vector<8x128xf32>
    %c0_3 = arith.constant 0 : index
    %c0_4 = arith.constant 0 : index
    %3 = vector.load %arg4[%c0_3, %c0_4] : memref<1x128xf32, #tpu.memory_space<vmem>>, vector<1x128xf32>
    %4 = vector.broadcast %3 : vector<1x128xf32> to vector<8x128xf32>
    %5 = arith.addf %2, %4 : vector<8x128xf32>
    %c0_5 = arith.constant 0 : index
    %c0_6 = arith.constant 0 : index
    %6 = vector.load %arg5[%c0_5, %c0_6] : memref<8x128xf32, #tpu.memory_space<vmem>>, vector<8x128xf32>
    tpu.vector_store %arg5[%c0_5, %c0_6], %5 {strides = array<i32>} : memref<8x128xf32, #tpu.memory_space<vmem>>, vector<8x128xf32>,
    return
  }
  func.func @transform_0(%arg0: i32, %arg1: i32) -> (i32, i32) {
    %c0_i32 = arith.constant 0 : i32
    %c0_i32_0 = arith.constant 0 : i32
    return %arg0, %c0_i32 : i32, i32
  }
  func.func @transform_1(%arg0: i32, %arg1: i32) -> (i32, i32) {
    %c0_i32 = arith.constant 0 : i32
    %c0_i32_0 = arith.constant 0 : i32
    return %c0_i32, %arg1 : i32, i32
  }
  func.func @transform_2(%arg0: i32, %arg1: i32) -> (i32, i32) {
    %c0_i32 = arith.constant 0 : i32
    %c0_i32_0 = arith.constant 0 : i32
    return %c0_i32, %arg1 : i32, i32
  }
  func.func @transform_3(%arg0: i32, %arg1: i32) -> (i32, i32) {
    %c0_i32 = arith.constant 0 : i32
    return %arg0, %arg1 : i32, i32
  }
}

</mosaic_0001>

<llo_original>
// kernel: tpu_custom_call.1
$region0: #{tpu_custom_call.1}
  #allocation0 [shape = 'u32[]', space=smem, size = 0x4, offset = 0x4, fixed_abs, tag = 'smem constant byte address 0x4 - core index']
  #allocation1 [shape = 'u32[72,128]{1,0:T(1,128)}', space=vmem, size = 0x9000, scoped, tag = 'internal scratch']
  %s0 = inlined_call_operand.hbm [shape: f32[16,32], index: 0, kind: input, shape index: {}]
  %s1 = inlined_call_operand.hbm [shape: f32[32,32], index: 1, kind: input, shape index: {}]
  %s2 = inlined_call_operand.vmem [shape: f32[1,32], index: 2, kind: input, shape index: {}]
  %s3 = inlined_call_operand.hbm [shape: f32[16,32], index: 3, kind: output, shape index: {}]
  %s4 = sld [smem:[#allocation0]]
  $region53: #{tpu_custom_call.1} parent=0
    _
  %s6 = ssub.s32 1, %s4
  %s7 = scalar_select 0, %s6, %s4
  $region1: #{tpu_custom_call.1} parent=0
    #allocation2 [shape = 'u8[8192]{0}', space=vmem, size = 0x2000, scoped, tag = 'input window, operand 0']
    #allocation3 [shape = 's32[2]{0}', space=sflag, size = 0x8, scoped, tag = 'scoped memory for tpu_custom_call.1']
    #allocation4 [shape = 's32[2]{0}', space=sflag, size = 0x8, scoped, tag = 'scoped memory for tpu_custom_call.1']
    #allocation5 [shape = 'u8[16384]{0}', space=vmem, size = 0x4000, scoped, tag = 'input window, operand 1, single buffered']
    #allocation6 [shape = 's32[1]{0}', space=sflag, size = 0x4, scoped, tag = 'scoped memory for tpu_custom_call.1']
    #allocation7 [shape = 'u8[8192]{0}', space=vmem, size = 0x2000, scoped, tag = 'output window, operand 0']
    %8 = vsyncpa [#allocation3], 0
    %s9 = scalar_lea.sflag [#allocation3], 1
    %10 = vsyncpa %s9, 0
    %11 = vsyncpa [#allocation6], 0
    %12 = vsyncpa [#allocation4], 0
    %s13 = scalar_lea.sflag [#allocation4], 1
    %14 = vsyncpa %s13, 0
    loop: start=0, step=1, limit=4
    $region2: #{tpu_custom_call.1} parent=1 // loop_pre_header
      _
    $region3: #{tpu_custom_call.1} parent=1 // loop_header
      %s16 = sphi 0, %s20
      %p17 = scmp.ge.s32.totalorder %s16, 4
      %s23 = sphi 0, %s35
      %s24 = sphi 0, %s31
      %s25 = sphi 0, %s23
      %s26 = sphi 0, %s24
      %s27 = sphi 0, %s25
      %s28 = sphi 0, %s26
      %s38 = sphi 0, %s40
      %s41 = sphi 0, %s38
      %s42 = sphi 0, %s41
      %s58 = sphi 0, %s42
      %s64 = sphi 0, %s66
      %s67 = sphi 0, %s64
      %s68 = sphi 0, %s67
      %s84 = sphi 0, %s68
      %s90 = sphi 0, %s92
      %s93 = sphi 0, %s90
      %s94 = sphi 0, %s93
      %s110 = sphi 0, %s94
      %s118 = sphi 0, %s120
      %s121 = sphi 0, %s118
      %s122 = sphi 0, %s121
      %s138 = sphi 0, %s122
    $region4: #{tpu_custom_call.1} parent=1 // loop_header_branch
      %19 = sbr.rel (%p17) target = $region8
    $region5: #{tpu_custom_call.1} parent=1 // loop_body
      %s21 = ssub.s32 %s16, 1
      %s22 = ssub.s32 %s16, 2
      %s29 = sadd.s32 1, %s24
      %p30 = scmp.ge.s32.totalorder %s29, 1
      %s31 = scalar_select %p30, 0, %s29
      %s32 = sadd.s32 1, %s23
      %s33 = scalar_select %p30, %s32, %s23
      %p34 = scmp.ge.s32.totalorder %s33, 2
      %s35 = scalar_select %p34, 0, %s33
      %s36 = ssub.s32 %s23, %s35
      %p37 = scmp.eq.s32.totalorder %s36, 0
      %s39 = sadd.s32 %s38, 1
      %s40 = scalar_select %p37, %s38, %s39
      %p43 = pneg %p37
      %p44 = scmp.eq.s32.totalorder %s16, 1
      %p45 = por %p43, %p44
      %p46 = scmp.ne.s32.totalorder %s38, %s41
      %p47 = scmp.eq.s32.totalorder %s16, 0
      %p48 = por %p46, %p47
      %p49 = scmp.ne.s32.totalorder %s38, %s41
      %p50 = scmp.eq.s32.totalorder %s21, 1
      %p51 = por %p49, %p50
      %p52 = scmp.ne.s32.totalorder %s41, %s42
      %p53 = scmp.eq.s32.totalorder %s21, 0
      %p54 = por %p52, %p53
      %p55 = scmp.ne.s32.totalorder %s41, %s42
      %p56 = scmp.eq.s32.totalorder %s22, 1
      %p57 = por %p55, %p56
      %p59 = scmp.ne.s32.totalorder %s42, %s58
      %p60 = scmp.eq.s32.totalorder %s22, 0
      %p61 = por %p59, %p60
      %s62 = ssub.s32 %s24, %s31
      %p63 = scmp.eq.s32.totalorder %s62, 0
      %s65 = sadd.s32 %s64, 1
      %s66 = scalar_select %p63, %s64, %s65
      %p69 = pneg %p63
      %p70 = scmp.eq.s32.totalorder %s16, 1
      %p71 = por %p69, %p70
      %p72 = scmp.ne.s32.totalorder %s64, %s67
      %p73 = scmp.eq.s32.totalorder %s16, 0
      %p74 = por %p72, %p73
      %p75 = scmp.ne.s32.totalorder %s64, %s67
      %p76 = scmp.eq.s32.totalorder %s21, 1
      %p77 = por %p75, %p76
      %p78 = scmp.ne.s32.totalorder %s67, %s68
      %p79 = scmp.eq.s32.totalorder %s21, 0
      %p80 = por %p78, %p79
      %p81 = scmp.ne.s32.totalorder %s67, %s68
      %p82 = scmp.eq.s32.totalorder %s22, 1
      %p83 = por %p81, %p82
      %p85 = scmp.ne.s32.totalorder %s68, %s84
      %p86 = scmp.eq.s32.totalorder %s22, 0
      %p87 = por %p85, %p86
      %s88 = ssub.s32 %s24, %s31
      %p89 = scmp.eq.s32.totalorder %s88, 0
      %s91 = sadd.s32 %s90, 1
      %s92 = scalar_select %p89, %s90, %s91
      %p95 = pneg %p89
      %p96 = scmp.eq.s32.totalorder %s16, 1
      %p97 = por %p95, %p96
      %p98 = scmp.ne.s32.totalorder %s90, %s93
      %p99 = scmp.eq.s32.totalorder %s16, 0
      %p100 = por %p98, %p99
      %p101 = scmp.ne.s32.totalorder %s90, %s93
      %p102 = scmp.eq.s32.totalorder %s21, 1
      %p103 = por %p101, %p102
      %p104 = scmp.ne.s32.totalorder %s93, %s94
      %p105 = scmp.eq.s32.totalorder %s21, 0
      %p106 = por %p104, %p105
      %p107 = scmp.ne.s32.totalorder %s93, %s94
      %p108 = scmp.eq.s32.totalorder %s22, 1
      %p109 = por %p107, %p108
      %p111 = scmp.ne.s32.totalorder %s94, %s110
      %p112 = scmp.eq.s32.totalorder %s22, 0
      %p113 = por %p111, %p112
      %s114 = ssub.s32 %s23, %s35
      %s115 = ssub.s32 %s24, %s31
      %s116 = sor.u32 %s114, %s115
      %p117 = scmp.eq.s32.totalorder %s116, 0
      %s119 = sadd.s32 %s118, 1
      %s120 = scalar_select %p117, %s118, %s119
      %p123 = pneg %p117
      %p124 = scmp.eq.s32.totalorder %s16, 1
      %p125 = por %p123, %p124
      %p126 = scmp.ne.s32.totalorder %s118, %s121
      %p127 = scmp.eq.s32.totalorder %s16, 0
      %p128 = por %p126, %p127
      %p129 = scmp.ne.s32.totalorder %s118, %s121
      %p130 = scmp.eq.s32.totalorder %s21, 1
      %p131 = por %p129, %p130
      %p132 = scmp.ne.s32.totalorder %s121, %s122
      %p133 = scmp.eq.s32.totalorder %s21, 0
      %p134 = por %p132, %p133
      %p135 = scmp.ne.s32.totalorder %s121, %s122
      %p136 = scmp.eq.s32.totalorder %s22, 1
      %p137 = por %p135, %p136
      %p139 = scmp.ne.s32.totalorder %s122, %s138
      %p140 = scmp.eq.s32.totalorder %s22, 0
      %p141 = por %p139, %p140
      %p142 = scmp.le.s32.totalorder 1, %s16
      %p143 = scmp.lt.s32.totalorder %s16, 3
      %p144 = pnand %p142, %p143
      %p145 = pneg %p144
      // Predicated region
      $region9: #{tpu_custom_call.1} parent=5 // pred_check
        _
      $region10: #{tpu_custom_call.1} parent=5 // pred_check_branch
        %147 = sbr.rel (%p144) target = $region12
      $region11: #{tpu_custom_call.1} parent=5 // pred_region
        %s148 = ssub.s32 %s16, 1
        // Predicated region
        $region13: #{tpu_custom_call.1} parent=11 // pred_check
          %p149 = pneg %p80
        $region14: #{tpu_custom_call.1} parent=11 // pred_check_branch
          %151 = sbr.rel (%p149) target = $region16
        $region15: #{tpu_custom_call.1} parent=11 // pred_region
          %153 = vsyncadd [#allocation6], 0
          %s154 = smul.addr %s26, 8
          %s155 = scalar_lea.hbm %s1, %s154
          %s156 = sshll.u32 %s155, 4
          %s157 = int_to_ptr.hbm [resolvable:$true] %s156
          %s158 = sshll.u32 [#allocation5], 4
          %s159 = int_to_ptr.vmem [resolvable:$true] %s158
          %164 = dma.hbm_to_vmem [thread:$0]  %s157, 512, %s159, [#allocation6], 128, 128, 8
        $region16: #{tpu_custom_call.1} parent=11 // pred_fallthru
          _
        // Predicated region
        $region17: #{tpu_custom_call.1} parent=11 // pred_check
          %p165 = pneg %p106
        $region18: #{tpu_custom_call.1} parent=11 // pred_check_branch
          %167 = sbr.rel (%p165) target = $region20
        $region19: #{tpu_custom_call.1} parent=11 // pred_region
          %p168 = scmp.lt.s32.totalorder %s26, 0
          %s169 = scalar_select %p168, %s26, 0
          %s170 = scalar_lea.vmem %s2, %s169
        $region20: #{tpu_custom_call.1} parent=11 // pred_fallthru
          _
      $region12: #{tpu_custom_call.1} parent=5 // pred_fallthru
        _
      %p171 = scmp.lt.s32.totalorder %s16, 2
      // Predicated region
      $region21: #{tpu_custom_call.1} parent=5 // pred_check
        %p172 = pneg %p171
      $region22: #{tpu_custom_call.1} parent=5 // pred_check_branch
        %174 = sbr.rel (%p172) target = $region24
      $region23: #{tpu_custom_call.1} parent=5 // pred_region
        // Predicated region
        $region25: #{tpu_custom_call.1} parent=23 // pred_check
          %p175 = pneg %p48
        $region26: #{tpu_custom_call.1} parent=23 // pred_check_branch
          %177 = sbr.rel (%p175) target = $region28
        $region27: #{tpu_custom_call.1} parent=23 // pred_region
          %s178 = sand.u32 %s38, 1
          %s179 = scalar_lea.sflag [#allocation3], %s178
          %s180 = sand.u32 %s38, 1
          %s181 = smul.addr %s180, 8
          %s182 = scalar_lea.vmem [#allocation2], %s181
          %184 = vsyncadd %s179, 0
          %s185 = smul.addr %s23, 8
          %s186 = scalar_lea.hbm %s0, %s185
          %s188 = sshll.u32 %s186, 4
          %s189 = int_to_ptr.hbm [resolvable:$true] %s188
          %s190 = sshll.u32 %s182, 4
          %s191 = int_to_ptr.vmem [resolvable:$true] %s190
          %193 = dma.hbm_to_vmem [thread:$0]  %s189, 128, %s191, %s179
        $region28: #{tpu_custom_call.1} parent=23 // pred_fallthru
          _
      $region24: #{tpu_custom_call.1} parent=5 // pred_fallthru
        _
      %p194 = scmp.le.s32.totalorder 1, %s16
      %p195 = scmp.lt.s32.totalorder %s16, 3
      %p196 = pnand %p194, %p195
      %p197 = pneg %p196
      // Predicated region
      $region29: #{tpu_custom_call.1} parent=5 // pred_check
        _
      $region30: #{tpu_custom_call.1} parent=5 // pred_check_branch
        %199 = sbr.rel (%p196) target = $region32
      $region31: #{tpu_custom_call.1} parent=5 // pred_region
        %s200 = ssub.s32 %s16, 1
        %s201 = sand.u32 %s41, 1
        %s202 = scalar_lea.sflag [#allocation3], %s201
        %s203 = sand.u32 %s41, 1
        %s204 = smul.addr %s203, 8
        %s205 = scalar_lea.vmem [#allocation2], %s204
        // Predicated region
        $region33: #{tpu_custom_call.1} parent=31 // pred_check
          %p206 = pneg %p54
        $region34: #{tpu_custom_call.1} parent=31 // pred_check_branch
          %208 = sbr.rel (%p206) target = $region36
        $region35: #{tpu_custom_call.1} parent=31 // pred_region
          %210 = dma.done %s202, 128
        $region36: #{tpu_custom_call.1} parent=31 // pred_fallthru
          _
        // Predicated region
        $region37: #{tpu_custom_call.1} parent=31 // pred_check
          %p211 = pneg %p80
        $region38: #{tpu_custom_call.1} parent=31 // pred_check_branch
          %213 = sbr.rel (%p211) target = $region40
        $region39: #{tpu_custom_call.1} parent=31 // pred_region
          %215 = dma.done [#allocation6], 512
        $region40: #{tpu_custom_call.1} parent=31 // pred_fallthru
          _
        %s216 = sand.u32 %s41, 1
        %s217 = scalar_lea.sflag [#allocation3], %s216
        %s218 = sand.u32 %s41, 1
        %s219 = smul.addr %s218, 8
        %s220 = scalar_lea.vmem [#allocation2], %s219
        %p221 = pneg %p54
        %p222 = pneg %p51
        %p223 = pneg %p80
        %p224 = pneg %p77
        %p225 = scmp.lt.s32.totalorder %s26, 0
        %s226 = scalar_select %p225, %s26, 0
        %s227 = scalar_lea.vmem %s2, %s226
        %p228 = pneg %p106
        %p229 = pneg %p103
        %p230 = pneg %p134
        %p231 = pneg %p131
        %s232 = sand.u32 %s121, 1
        %s233 = scalar_lea.sflag [#allocation4], %s232
        %s234 = sand.u32 %s121, 1
        %s235 = smul.addr %s234, 8
        %s236 = scalar_lea.vmem [#allocation7], %s235
        %p237 = scmp.lt.s32.totalorder %s26, 0
        %s238 = scalar_select %p237, %s26, 0
        %s239 = scalar_lea.vmem %s2, %s238
        %v240 = vld [vmem:[%s205] sm:$0xff]
        %v241 = vld [vmem:[#allocation5] sm:$0xff]
        %v242 = vld [vmem:[#allocation5 + $0x8] sm:$0xff]
        %v243 = vld [vmem:[#allocation5 + $0x10] sm:$0xff]
        %v244 = vld [vmem:[#allocation5 + $0x18] sm:$0xff]
        %v245 = vld [vmem:[%s239] sm:$0x1]
        %v247 = vperm.slane %v245, 0
        %vm249 = vcmask 261120
        %v251 = vsel %vm249, %v240, 0
        %253 = vmatpush.msra.mxu0 0.0
        %254 = vmatpush.msra.mxu0 0.0
        %255 = vmatpush.msra.mxu0 0.0
        %256 = vmatpush.msra.mxu0 0.0
        %257 = vmatpush.msra.mxu0 0.0
        %258 = vmatpush.msra.mxu0 0.0
        %259 = vmatpush.msra.mxu0 0.0
        %260 = vmatpush.msra.mxu0 0.0
        %261 = vmatpush.msra.mxu0 0.0
        %262 = vmatpush.msra.mxu0 0.0
        %263 = vmatpush.msra.mxu0 0.0
        %264 = vmatpush.msra.mxu0 0.0
        %265 = vmatpush.msra.mxu0 %v244
        %266 = vmatpush.msra.mxu0 %v243
        %267 = vmatpush.msra.mxu0 %v242
        %268 = vmatpush.msra.mxu0 %v241
        %269 = vmatmul.f32.gmra.mxu0 %v251
        %v270 = vpop.f32.mrf.mxu0
        %v271 = vadd.f32 %v247, %v270
        %272 = vdwg.mxu0
        %273 = vst [vmem:[%s236] sm:$0xff] %v271
        %s274 = sand.u32 %s121, 1
        %s275 = scalar_lea.sflag [#allocation4], %s274
        %s276 = sand.u32 %s121, 1
        %s277 = smul.addr %s276, 8
        %s278 = scalar_lea.vmem [#allocation7], %s277
        // Predicated region
        $region41: #{tpu_custom_call.1} parent=31 // pred_check
          %p279 = pneg %p131
        $region42: #{tpu_custom_call.1} parent=31 // pred_check_branch
          %281 = sbr.rel (%p279) target = $region44
        $region43: #{tpu_custom_call.1} parent=31 // pred_region
          %283 = vsyncadd %s275, 0
          %s284 = sadd.s32 %s26, %s25
          %s285 = smul.addr %s284, 8
          %s286 = scalar_lea.hbm %s3, %s285
          %s288 = sshll.u32 %s278, 4
          %s289 = int_to_ptr.vmem [resolvable:$true] %s288
          %s290 = sshll.u32 %s286, 4
          %s291 = int_to_ptr.hbm [resolvable:$true] %s290
          %293 = dma.vmem_to_hbm [thread:$0]  %s289, 128, %s291, %s275
        $region44: #{tpu_custom_call.1} parent=31 // pred_fallthru
          _
      $region32: #{tpu_custom_call.1} parent=5 // pred_fallthru
        _
      %p294 = scmp.le.s32.totalorder 2, %s16
      // Predicated region
      $region45: #{tpu_custom_call.1} parent=5 // pred_check
        %p295 = pneg %p294
      $region46: #{tpu_custom_call.1} parent=5 // pred_check_branch
        %297 = sbr.rel (%p295) target = $region48
      $region47: #{tpu_custom_call.1} parent=5 // pred_region
        %s298 = ssub.s32 %s16, 2
        // Predicated region
        $region49: #{tpu_custom_call.1} parent=47 // pred_check
          %p299 = pneg %p137
        $region50: #{tpu_custom_call.1} parent=47 // pred_check_branch
          %301 = sbr.rel (%p299) target = $region52
        $region51: #{tpu_custom_call.1} parent=47 // pred_region
          %s302 = sand.u32 %s122, 1
          %s303 = scalar_lea.sflag [#allocation4], %s302
          %s304 = sand.u32 %s122, 1
          %s305 = smul.addr %s304, 8
          %s306 = scalar_lea.vmem [#allocation7], %s305
          %308 = dma.done %s303, 128
        $region52: #{tpu_custom_call.1} parent=47 // pred_fallthru
          _
      $region48: #{tpu_custom_call.1} parent=5 // pred_fallthru
        _
    $region6: #{tpu_custom_call.1} parent=1 // loop_footer
      %s20 = sadd.s32 1, %s16
    $region7: #{tpu_custom_call.1} parent=1 // loop_footer_branch
      %15 = sbr.rel target = $region3
    $region8: #{tpu_custom_call.1} parent=1 // loop_exit
      _
    %309 = vsyncpa [#allocation3], 1
    %s310 = scalar_lea.sflag [#allocation3], 1
    %311 = vsyncpa %s310, 1
    %312 = vsyncpa [#allocation6], 1
    %313 = vsyncpa [#allocation4], 1
    %s314 = scalar_lea.sflag [#allocation4], 1
    %315 = vsyncpa %s314, 1

</llo_original>
